<compile_context>
chip_gen: v7x
topology: tpu7x:2x2x1
jax: 0.10.0
libtpu: 0.0.40
codegen_flags: <defaults>
</compile_context>

<pallas_src>
from functools import partial

import jax
import jax.numpy as jnp
from jax.experimental import pallas as pl
from jax.experimental.pallas import tpu as pltpu


NEG_INF = -1e30  # finite "minus infinity" for masking (avoids NaN in softmax)


def _round_up(x: int, m: int) -> int:
    return (x + m - 1) // m * m


def _maybe_vmem_limit(est_bytes: int):
    """Return an explicit scoped-VMEM limit only when the estimate is large."""
    if est_bytes <= 12 * 1024 * 1024:
        return None
    return int(min(est_bytes * 3 // 2 + (4 << 20), 60 * 1024 * 1024))


# ---------------------------------------------------------------------------
# Linear (x @ W + b) kernel: grid over row tiles, weights resident per step.
# ---------------------------------------------------------------------------
def _linear_kernel(x_ref, w_ref, b_ref, o_ref):
    # bf16 operands on the MXU, f32 accumulation.
    acc = jnp.dot(x_ref[...].astype(jnp.bfloat16), w_ref[...],
                  preferred_element_type=jnp.float32)
    o_ref[...] = (acc + b_ref[...]).astype(o_ref.dtype)


def linear_pallas(x, w, b=None, out_dtype=None):
    """x: (M, Cin), w: (Cin, Cout) bf16, b: (Cout,) f32 or None -> (M, Cout)."""
    M, Cin = x.shape
    Cout = w.shape[1]
    if out_dtype is None:
        out_dtype = x.dtype
    if b is None:
        b = jnp.zeros((Cout,), jnp.float32)
    b2 = b.reshape(1, Cout).astype(jnp.float32)

    TM = min(_round_up(M, 8), 512)
    M_pad = _round_up(M, TM)
    x_p = jnp.pad(x, ((0, M_pad - M), (0, 0)))

    xb = x_p.dtype.itemsize
    ob = jnp.dtype(out_dtype).itemsize
    est = 2 * TM * Cin * xb + 2 * Cin * Cout * 2 + 2 * TM * Cout * ob + 2 * Cout * 4

    out = pl.pallas_call(
        _linear_kernel,
        out_shape=jax.ShapeDtypeStruct((M_pad, Cout), out_dtype),
        grid_spec=pltpu.PrefetchScalarGridSpec(
            num_scalar_prefetch=0,
            grid=(M_pad // TM,),
            in_specs=[
                pl.BlockSpec((TM, Cin), lambda i: (i, 0)),
                pl.BlockSpec((Cin, Cout), lambda i: (0, 0)),   # weight resident
                pl.BlockSpec((1, Cout), lambda i: (0, 0)),
            ],
            out_specs=pl.BlockSpec((TM, Cout), lambda i: (i, 0)),
        ),
        compiler_params=pltpu.CompilerParams(
            dimension_semantics=("parallel",),
            vmem_limit_bytes=_maybe_vmem_limit(est)),
    )(x_p, w, b2)
    return out[:M]


# ---------------------------------------------------------------------------
# Flash attention kernel (online softmax, optional int8 mask shared per head).
# grid = (B*H, Nq_tiles, Nk_tiles); kv axis is the reduction axis.
# ---------------------------------------------------------------------------
def _mha_flash_kernel(*refs, tk, kv_resident, has_mask, nk_valid, need_kv_iota):
    if has_mask:
        q_ref, k_ref, v_ref, mask_ref, o_ref, m_sc, l_sc, acc_sc = refs
    else:
        q_ref, k_ref, v_ref, o_ref, m_sc, l_sc, acc_sc = refs
        mask_ref = None

    j = pl.program_id(2)

    @pl.when(j == 0)
    def _():
        m_sc[...] = jnp.full_like(m_sc, -jnp.inf)
        l_sc[...] = jnp.zeros_like(l_sc)
        acc_sc[...] = jnp.zeros_like(acc_sc)

    q = q_ref[0]                                   # (TQ, Dh) bf16, pre-scaled
    if kv_resident:
        kv0 = pl.multiple_of(j * tk, tk)
        k = k_ref[0, pl.ds(kv0, tk), :]            # (TK, Dh) slice of resident K
        v = v_ref[0, pl.ds(kv0, tk), :]
    else:
        k = k_ref[0]                               # (TK, Dh)
        v = v_ref[0]

    # s = q @ k^T  (scale already folded into q) -> (TQ, TK), MXU, f32 acc
    s = jax.lax.dot_general(q, k, (((1,), (1,)), ((), ())),
                            preferred_element_type=jnp.float32)

    if has_mask:
        mvals = mask_ref[0].astype(jnp.float32)    # (TQ, TK): 0 = masked out
        s = jnp.where(mvals != 0.0, s, NEG_INF)
    elif need_kv_iota:
        # No user mask, but Nk was padded: mask the padded key columns.
        col = jax.lax.broadcasted_iota(jnp.int32, s.shape, 1) + j * tk
        s = jnp.where(col < nk_valid, s, NEG_INF)

    m_prev = m_sc[...]                                            # (TQ, 1)
    m_new = jnp.maximum(m_prev, jnp.max(s, axis=-1, keepdims=True))
    alpha = jnp.exp(m_prev - m_new)
    p = jnp.exp(s - m_new)                                        # (TQ, TK) f32

    l_sc[...] = alpha * l_sc[...] + jnp.sum(p, axis=-1, keepdims=True)
    acc_sc[...] = alpha * acc_sc[...] + jnp.dot(
        p.astype(v.dtype), v, preferred_element_type=jnp.float32)
    m_sc[...] = m_new

    @pl.when(j == pl.num_programs(2) - 1)
    def _():
        o_ref[0] = (acc_sc[...] *
                    pl.reciprocal(l_sc[...], approx=True)).astype(o_ref.dtype)


def flash_attention_pallas(q, k, v, mask=None, heads_per_group=1):
    """q: (BH, Nq, Dh), k/v: (BH, Nk, Dh) bf16 (q pre-scaled).
    mask: optional int8 (BH // heads_per_group, Nq, Nk), nonzero = attend."""
    BH, Nq, Dh = q.shape
    Nk = k.shape[1]

    # Tile sizes (no head_dim padding; Dh block equals the full array dim).
    TQ = min(128, _round_up(Nq, 8))
    Nq_pad = _round_up(Nq, TQ)
    TK = min(256, _round_up(Nk, 128))
    Nk_pad = _round_up(Nk, TK)

    q_p = jnp.pad(q, ((0, 0), (0, Nq_pad - Nq), (0, 0)))
    k_p = jnp.pad(k, ((0, 0), (0, Nk_pad - Nk), (0, 0)))
    v_p = jnp.pad(v, ((0, 0), (0, Nk_pad - Nk), (0, 0)))

    has_mask = mask is not None
    if has_mask:
        # Padded key columns / query rows pad with 0 (= masked out).
        mask_p = jnp.pad(mask, ((0, 0), (0, Nq_pad - Nq), (0, Nk_pad - Nk)))

    itemsize = q.dtype.itemsize
    # Keep K and V resident in VMEM across q tiles when they fit a small budget
    # (2 arrays x double-buffered x Nk_pad x Dh).
    kv_buf_bytes = 2 * 2 * Nk_pad * Dh * itemsize
    kv_resident = kv_buf_bytes <= 8 * 1024 * 1024

    grid = (BH, Nq_pad // TQ, Nk_pad // TK)

    if kv_resident:
        k_spec = pl.BlockSpec((1, Nk_pad, Dh), lambda b, i, j: (b, 0, 0))
        v_spec = pl.BlockSpec((1, Nk_pad, Dh), lambda b, i, j: (b, 0, 0))
    else:
        k_spec = pl.BlockSpec((1, TK, Dh), lambda b, i, j: (b, j, 0))
        v_spec = pl.BlockSpec((1, TK, Dh), lambda b, i, j: (b, j, 0))

    in_specs = [pl.BlockSpec((1, TQ, Dh), lambda b, i, j: (b, i, 0)),
                k_spec, v_spec]
    inputs = [q_p, k_p, v_p]
    if has_mask:
        hpg = int(heads_per_group)
        in_specs.append(
            pl.BlockSpec((1, TQ, TK), lambda b, i, j: (b // hpg, i, j)))
        inputs.append(mask_p)

    kernel = partial(_mha_flash_kernel, tk=TK, kv_resident=kv_resident,
                     has_mask=has_mask, nk_valid=Nk,
                     need_kv_iota=(Nk_pad != Nk))

    # Rough double-buffered VMEM budget; set vmem_limit_bytes when large (v7x).
    est = 2 * TQ * Dh * itemsize                       # q tiles
    est += kv_buf_bytes if kv_resident else 2 * 2 * TK * Dh * itemsize
    est += 2 * TQ * Dh * itemsize                      # out tiles
    if has_mask:
        est += 2 * TQ * TK                             # int8 mask tiles
    est += TQ * (Dh + 2) * 4                           # scratch

    out = pl.pallas_call(
        kernel,
        out_shape=jax.ShapeDtypeStruct((BH, Nq_pad, Dh), q.dtype),
        grid_spec=pltpu.PrefetchScalarGridSpec(
            num_scalar_prefetch=0,
            grid=grid,
            in_specs=in_specs,
            out_specs=pl.BlockSpec((1, TQ, Dh), lambda b, i, j: (b, i, 0)),
            scratch_shapes=[
                pltpu.VMEM((TQ, 1), jnp.float32),    # running max
                pltpu.VMEM((TQ, 1), jnp.float32),    # running denom
                pltpu.VMEM((TQ, Dh), jnp.float32),   # accumulator
            ],
        ),
        compiler_params=pltpu.CompilerParams(
            dimension_semantics=("parallel", "parallel", "arbitrary"),
            vmem_limit_bytes=_maybe_vmem_limit(est)),
    )(*inputs)

    return out[:, :Nq, :]


# ---------------------------------------------------------------------------
# Module wrapper
# ---------------------------------------------------------------------------
class CrossAttentionWithMask:
    """JAX/Pallas mirror of the PyTorch CrossAttentionWithMask module."""

    def __init__(self, dim, rope=None, num_heads=8, qkv_bias=False,
                 attn_drop=0.0, proj_drop=0.0, *, key=None):
        assert dim % num_heads == 0
        self.dim = dim
        self.num_heads = num_heads
        self.head_dim = dim // num_heads
        self.scale = self.head_dim ** (-0.5)
        self.rope = rope  # TODO(synk): rope is None in this config; rotary embedding not implemented.
        # attn_drop / proj_drop are identity at inference (and default to 0.0).

        if key is None:
            key = jax.random.PRNGKey(0)
        ks = jax.random.split(key, 8)
        lim = 1.0 / (dim ** 0.5)

        def u(k, shape):
            return jax.random.uniform(k, shape, jnp.float32, -lim, lim)

        # Weights stored in bf16 (MXU-native), biases in f32 (added to f32 acc).
        self.wq = u(ks[0], (dim, dim)).astype(jnp.bfloat16)
        self.bq = u(ks[1], (dim,)) if qkv_bias else None
        self.wk = u(ks[2], (dim, dim)).astype(jnp.bfloat16)
        self.bk = u(ks[3], (dim,)) if qkv_bias else None
        self.wv = u(ks[4], (dim, dim)).astype(jnp.bfloat16)
        self.bv = u(ks[5], (dim,)) if qkv_bias else None
        self.wo = u(ks[6], (dim, dim)).astype(jnp.bfloat16)
        self.bo = u(ks[7], (dim,))

    def _prepare_mask(self, attn_mask, B, Nq, Nk):
        """Boolean/int mask -> (int8 (G, Nq, Nk), heads_per_group). Nonzero = attend."""
        if attn_mask is None:
            return None, 1
        m = attn_mask
        if jnp.issubdtype(m.dtype, jnp.floating):
            # TODO(synk): float additive attn_mask not supported in the compact int8 path.
            raise NotImplementedError("float additive attn_mask not supported")
        if m.ndim == 2:
            m = m[None, None]
        elif m.ndim == 3:
            m = m[:, None]
        # m: (B or 1, H or 1, Nq, Nk)
        if m.shape[1] == 1:
            mm = jnp.broadcast_to(m[:, 0], (B, Nq, Nk))
            hpg = self.num_heads                 # all heads share one mask tile
        else:
            mm = jnp.broadcast_to(m, (B, self.num_heads, Nq, Nk))
            mm = mm.reshape(B * self.num_heads, Nq, Nk)
            hpg = 1
        return mm.astype(jnp.int8), hpg

    def __call__(self, query, key, value, qpos=None, kpos=None, attn_mask=None):
        B, Nq, C = query.shape
        Nk = key.shape[1]
        H, Dh = self.num_heads, self.head_dim

        # Fold the softmax scale into the q projection (completely free).
        wq_s = self.wq * self.scale
        bq_s = None if self.bq is None else self.bq * self.scale

        q = linear_pallas(query.reshape(B * Nq, C), wq_s, bq_s,
                          out_dtype=jnp.bfloat16)

        if key is value:
            # Fused k/v projection: one matmul shares the input tile reads.
            wkv = jnp.concatenate([self.wk, self.wv], axis=1)
            if self.bk is None:
                bkv = None
            else:
                bkv = jnp.concatenate([self.bk, self.bv])
            kv = linear_pallas(key.reshape(B * Nk, C), wkv, bkv,
                               out_dtype=jnp.bfloat16)
            k, v = kv[:, :C], kv[:, C:]
        else:
            k = linear_pallas(key.reshape(B * Nk, C), self.wk, self.bk,
                              out_dtype=jnp.bfloat16)
            v = linear_pallas(value.reshape(B * Nk, C), self.wv, self.bv,
                              out_dtype=jnp.bfloat16)

        # (B, N, H, Dh) -> (B, H, N, Dh) -> (B*H, N, Dh)
        q = q.reshape(B, Nq, H, Dh).transpose(0, 2, 1, 3).reshape(B * H, Nq, Dh)
        k = k.reshape(B, Nk, H, Dh).transpose(0, 2, 1, 3).reshape(B * H, Nk, Dh)
        v = v.reshape(B, Nk, H, Dh).transpose(0, 2, 1, 3).reshape(B * H, Nk, Dh)

        mask_i8, hpg = self._prepare_mask(attn_mask, B, Nq, Nk)

        x = flash_attention_pallas(q, k, v, mask_i8, heads_per_group=hpg)

        x = x.reshape(B, H, Nq, Dh).transpose(0, 2, 1, 3).reshape(B * Nq, C)
        x = linear_pallas(x, self.wo, self.bo, out_dtype=query.dtype)
        # proj_drop: identity (p=0.0 / inference)
        return x.reshape(B, Nq, C)


# ---------------------------------------------------------------------------
# Pure-JAX reference for the correctness check (f32 math, same bf16 weights)
# ---------------------------------------------------------------------------
def reference_forward(mod, query, key, value, attn_mask):
    B, Nq, C = query.shape
    Nk = key.shape[1]
    H, Dh = mod.num_heads, mod.head_dim

    def lin(x, w, b):
        y = x @ w.astype(jnp.float32)
        return y + b if b is not None else y

    q = lin(query, mod.wq, mod.bq).reshape(B, Nq, H, Dh).transpose(0, 2, 1, 3)
    k = lin(key, mod.wk, mod.bk).reshape(B, Nk, H, Dh).transpose(0, 2, 1, 3)
    v = lin(value, mod.wv, mod.bv).reshape(B, Nk, H, Dh).transpose(0, 2, 1, 3)

    s = jnp.einsum('bhqd,bhkd->bhqk', q, k) * mod.scale
    if attn_mask is not None:
        if attn_mask.dtype == jnp.bool_:
            s = s + jnp.where(attn_mask, 0.0, NEG_INF)
        else:
            s = s + attn_mask
    p = jax.nn.softmax(s, axis=-1)
    o = jnp.einsum('bhqk,bhkd->bhqd', p, v)
    o = o.transpose(0, 2, 1, 3).reshape(B, Nq, C)
    return lin(o, mod.wo, mod.bo)


if __name__ == "__main__":
    root = jax.random.PRNGKey(0)
    k_param, k_q, k_k, k_v, k_m = jax.random.split(root, 5)

    # Small cross-attention shapes: batch=2, Nq=8, Nk=12, dim=32, heads=8.
    B, Nq, Nk, C, H = 2, 8, 12, 32, 8
    query = jax.random.normal(k_q, (B, Nq, C), jnp.float32)
    key_in = jax.random.normal(k_k, (B, Nk, C), jnp.float32)
    value = jax.random.normal(k_v, (B, Nk, C), jnp.float32)

    # Boolean attention mask, broadcastable over heads; ensure every query row
    # can attend to at least one key.
    attn_mask = jax.random.bernoulli(k_m, 0.7, (B, 1, Nq, Nk))
    attn_mask = attn_mask.at[..., 0].set(True)

    mod = CrossAttentionWithMask(C, rope=None, num_heads=H, qkv_bias=True,
                                 key=k_param)

    tol = dict(atol=3e-2, rtol=3e-2)   # bf16 MXU path vs f32 reference

    # 1) masked path (bool mask shared across heads -> compact int8 kernel input)
    out = jax.block_until_ready(
        mod(query, key_in, value, None, None, attn_mask))
    ref = jax.block_until_ready(
        reference_forward(mod, query, key_in, value, attn_mask))
    assert out.shape == (B, Nq, C)
    assert bool(jnp.all(jnp.isfinite(out)))
    assert jnp.allclose(out, ref, **tol), float(jnp.max(jnp.abs(out - ref)))

    # 2) unmasked path (no mask tensor streamed at all)
    out2 = jax.block_until_ready(mod(query, key_in, value, None, None, None))
    ref2 = reference_forward(mod, query, key_in, value, None)
    assert jnp.allclose(out2, ref2, **tol), float(jnp.max(jnp.abs(out2 - ref2)))

    # 3) fused k/v projection path (key is value)
    out3 = jax.block_until_ready(
        mod(query, key_in, key_in, None, None, attn_mask))
    ref3 = reference_forward(mod, query, key_in, key_in, attn_mask)
    assert jnp.allclose(out3, ref3, **tol), float(jnp.max(jnp.abs(out3 - ref3)))

    print("KERNEL_OK")
</pallas_src>

<mosaic_0001>
module attributes {stable_mosaic.version = 11 : i64} {
  func.func @_linear_kernel(%arg0: i32, %arg1: memref<16x32xf32, #tpu.memory_space<vmem>>, %arg2: memref<32x32xbf16, #tpu.memory_space<vmem>>, %arg3: memref<1x32xf32, #tpu.memory_space<vmem>>, %arg4: memref<16x32xbf16, #tpu.memory_space<vmem>>) attributes {dimension_semantics = [#tpu.dimension_semantics<parallel>], iteration_bounds = array<i64: 1>, scalar_prefetch = 0 : i64, scratch_operands = 0 : i64, tpu.core_type = #tpu.core_type<tc>, window_params = [{transform_indices = @transform_0, window_bounds = array<i64: 16, 32>}, {pipeline_mode = #tpu.pipeline_mode<synchronous>, transform_indices = @transform_1, window_bounds = array<i64: 32, 32>}, {pipeline_mode = #tpu.pipeline_mode<synchronous>, transform_indices = @transform_2, window_bounds = array<i64: 1, 32>}, {transform_indices = @transform_3, window_bounds = array<i64: 16, 32>}]} {
    %c0 = arith.constant 0 : index
    %c0_0 = arith.constant 0 : index
    %0 = vector.load %arg1[%c0, %c0_0] : memref<16x32xf32, #tpu.memory_space<vmem>>, vector<16x32xf32>
    %1 = arith.truncf %0 : vector<16x32xf32> to vector<16x32xbf16>
    %c0_1 = arith.constant 0 : index
    %c0_2 = arith.constant 0 : index
    %2 = vector.load %arg2[%c0_1, %c0_2] : memref<32x32xbf16, #tpu.memory_space<vmem>>, vector<32x32xbf16>
    %cst = arith.constant dense<0.000000e+00> : vector<16x32xf32>
    %3 = tpu.matmul %1, %2, %cst {dimension_numbers = #tpu.dot_dimension_numbers<[1], [0], [0], [1], [0, 0, 1, 1], [], []>} : vector<16x32xbf16>, vector<32x32xbf16>, vector<16x32xf32> -> vector<16x32xf32>
    %c0_3 = arith.constant 0 : index
    %c0_4 = arith.constant 0 : index
    %4 = vector.load %arg3[%c0_3, %c0_4] : memref<1x32xf32, #tpu.memory_space<vmem>>, vector<1x32xf32>
    %5 = vector.broadcast %4 : vector<1x32xf32> to vector<16x32xf32>
    %6 = arith.addf %3, %5 : vector<16x32xf32>
    %7 = arith.truncf %6 : vector<16x32xf32> to vector<16x32xbf16>
    %c0_5 = arith.constant 0 : index
    %c0_6 = arith.constant 0 : index
    %8 = vector.load %arg4[%c0_5, %c0_6] : memref<16x32xbf16, #tpu.memory_space<vmem>>, vector<16x32xbf16>
    tpu.vector_store %arg4[%c0_5, %c0_6], %7 {strides = array<i32>} : memref<16x32xbf16, #tpu.memory_space<vmem>>, vector<16x32xbf16>,
    return
  }
  func.func @transform_0(%arg0: i32) -> (i32, i32) {
    %c0_i32 = arith.constant 0 : i32
    %c0_i32_0 = arith.constant 0 : i32
    return %arg0, %c0_i32 : i32, i32
  }
  func.func @transform_1(%arg0: i32) -> (i32, i32) {
    %c0_i32 = arith.constant 0 : i32
    %c0_i32_0 = arith.constant 0 : i32
    %c0_i32_1 = arith.constant 0 : i32
    return %c0_i32, %c0_i32_0 : i32, i32
  }
  func.func @transform_2(%arg0: i32) -> (i32, i32) {
    %c0_i32 = arith.constant 0 : i32
    %c0_i32_0 = arith.constant 0 : i32
    %c0_i32_1 = arith.constant 0 : i32
    return %c0_i32, %c0_i32_0 : i32, i32
  }
  func.func @transform_3(%arg0: i32) -> (i32, i32) {
    %c0_i32 = arith.constant 0 : i32
    %c0_i32_0 = arith.constant 0 : i32
    return %arg0, %c0_i32 : i32, i32
  }
}

</mosaic_0001>

<llo_original>
// kernel: tpu_custom_call.1
$region0: #{tpu_custom_call.1}
  #allocation0 [shape = 'u32[]', space=smem, size = 0x4, offset = 0x4, fixed_abs, tag = 'smem constant byte address 0x4 - core index']
  #allocation1 [shape = 'u32[144,128]{1,0:T(1,128)}', space=vmem, size = 0x12000, scoped, tag = 'internal scratch']
  %s0 = inlined_call_operand.hbm [shape: f32[16,32], index: 0, kind: input, shape index: {}]
  %s1 = inlined_call_operand.hbm [shape: bf16[32,32], index: 1, kind: input, shape index: {}]
  %s2 = inlined_call_operand.vmem [shape: f32[1,32], index: 2, kind: input, shape index: {}]
  %s3 = inlined_call_operand.hbm [shape: bf16[16,32], index: 3, kind: output, shape index: {}]
  %s4 = sld [smem:[#allocation0]]
  $region30: #{tpu_custom_call.1} parent=0
    _
  %s6 = ssub.s32 1, %s4
  %s7 = scalar_select 0, %s6, %s4
  $region1: #{tpu_custom_call.1} parent=0
    #allocation2 [shape = 'u8[8192]{0}', space=vmem, size = 0x2000, scoped, tag = 'input window, operand 0, single buffered']
    #allocation3 [shape = 's32[1]{0}', space=sflag, size = 0x4, scoped, tag = 'scoped memory for tpu_custom_call.1']
    #allocation4 [shape = 's32[1]{0}', space=sflag, size = 0x4, scoped, tag = 'scoped memory for tpu_custom_call.1']
    #allocation5 [shape = 'u8[8192]{0}', space=vmem, size = 0x2000, scoped, tag = 'input window, operand 1, single buffered']
    #allocation6 [shape = 's32[1]{0}', space=sflag, size = 0x4, scoped, tag = 'scoped memory for tpu_custom_call.1']
    #allocation7 [shape = 'u8[4096]{0}', space=vmem, size = 0x1000, scoped, tag = 'output window, operand 0, single buffered']
    %8 = vsyncpa [#allocation3], 0
    %9 = vsyncpa [#allocation6], 0
    %10 = vsyncpa [#allocation4], 0
    // Predicated region
    $region2: #{tpu_custom_call.1} parent=1 // pred_check
      _
    $region3: #{tpu_custom_call.1} parent=1 // pred_check_branch
      %12 = sbr.rel (0) target = $region5
    $region4: #{tpu_custom_call.1} parent=1 // pred_region
      %s14 = ssub.s32 256, 256
      %15 = vsyncadd [#allocation3], %s14
      %s16 = sshll.u32 [#allocation2], 4
      %s17 = int_to_ptr.vmem [resolvable:$true] %s16
      %22 = dma.hbm_to_vmem [thread:$0]  %s0, 256, %s17, [#allocation3], 128, 128, 8
    $region5: #{tpu_custom_call.1} parent=1 // pred_fallthru
      _
    // Predicated region
    $region6: #{tpu_custom_call.1} parent=1 // pred_check
      _
    $region7: #{tpu_custom_call.1} parent=1 // pred_check_branch
      %24 = sbr.rel (0) target = $region9
    $region8: #{tpu_custom_call.1} parent=1 // pred_region
      %s26 = ssub.s32 256, 256
      %27 = vsyncadd [#allocation6], %s26
      %s28 = sshll.u32 [#allocation5], 4
      %s29 = int_to_ptr.vmem [resolvable:$true] %s28
      %34 = dma.hbm_to_vmem [thread:$0]  %s1, 256, %s29, [#allocation6], 64, 64, 4
    $region9: #{tpu_custom_call.1} parent=1 // pred_fallthru
      _
    // Predicated region
    $region10: #{tpu_custom_call.1} parent=1 // pred_check
      _
    $region11: #{tpu_custom_call.1} parent=1 // pred_check_branch
      %36 = sbr.rel (0) target = $region13
    $region12: #{tpu_custom_call.1} parent=1 // pred_region
      _
    $region13: #{tpu_custom_call.1} parent=1 // pred_fallthru
      _
    // Predicated region
    $region14: #{tpu_custom_call.1} parent=1 // pred_check
      _
    $region15: #{tpu_custom_call.1} parent=1 // pred_check_branch
      %38 = sbr.rel (0) target = $region17
    $region16: #{tpu_custom_call.1} parent=1 // pred_region
      %39 = dma.done [#allocation3], 256
    $region17: #{tpu_custom_call.1} parent=1 // pred_fallthru
      _
    // Predicated region
    $region18: #{tpu_custom_call.1} parent=1 // pred_check
      _
    $region19: #{tpu_custom_call.1} parent=1 // pred_check_branch
      %41 = sbr.rel (0) target = $region21
    $region20: #{tpu_custom_call.1} parent=1 // pred_region
      %42 = dma.done [#allocation6], 256
    $region21: #{tpu_custom_call.1} parent=1 // pred_fallthru
      _
    %v44 = vld [vmem:[#allocation2] sm:$0xff]
    %v45 = vld [vmem:[#allocation2 + $0x8] sm:$0xff]
    %v46 = vpack.c.bf16 %v45, %v44
    %v47 = vld [vmem:[#allocation5] sm:$0xf]
    %v48 = vld [vmem:[#allocation5 + $0x4] sm:$0xf]
    %v49 = vld [vmem:[#allocation5 + $0x8] sm:$0xf]
    %v50 = vld [vmem:[#allocation5 + $0xc] sm:$0xf]
    %v51 = vld [vmem:[%s2] sm:$0x1]
    %v53 = vlaneseq
    %v54 = vshrl.u32 %v53, 7
    %v55 = vsub.s32 0, %v54
    %v56 = vrot.slane %v51, %v55
    %v62 = vunpack.c.l.b16 %v47
    %v63 = vunpack.c.l.b16 %v48
    %v64 = vunpack.c.l.b16 %v49
    %v65 = vunpack.c.l.b16 %v50
    %v66 = vpack.c.b16 %v63, %v62
    %v67 = vpack.c.b16 %v65, %v64
    %vm70 = vcmask 261120
    %v72 = vsel %vm70, %v46, 0
    %74 = vmatprep.subr.bf16.mxu0 0
    %75 = vmatpush1.bf16.msra.mxu0 %v66
    %76 = vmatprep.subr.bf16.mxu0 0
    %77 = vmatpush1.bf16.msra.mxu0 %v67
    %78 = vmatprep.subr.bf16.mxu0 0
    %79 = vmatpush1.bf16.msra.mxu0 0
    %80 = vmatprep.subr.bf16.mxu0 0
    %81 = vmatpush1.bf16.msra.mxu0 0
    %82 = vmatprep.subr.bf16.mxu0 0
    %83 = vmatpush1.bf16.msra.mxu0 0
    %84 = vmatprep.subr.bf16.mxu0 0
    %85 = vmatpush1.bf16.msra.mxu0 0
    %86 = vmatprep.subr.bf16.mxu0 0
    %87 = vmatpush1.bf16.msra.mxu0 0
    %88 = vmatprep.subr.bf16.mxu0 0
    %89 = vmatpush1.bf16.msra.mxu0 0
    %90 = vmatprep.subr.bf16.mxu0 0
    %91 = vmatpush1.bf16.msra.mxu0 0
    %92 = vmatprep.subr.bf16.mxu0 0
    %93 = vmatpush1.bf16.msra.mxu0 0
    %94 = vmatprep.subr.bf16.mxu0 0
    %95 = vmatpush1.bf16.msra.mxu0 0
    %96 = vmatprep.subr.bf16.mxu0 0
    %97 = vmatpush1.bf16.msra.mxu0 0
    %98 = vmatprep.subr.bf16.mxu0 0
    %99 = vmatpush1.bf16.msra.mxu0 0
    %100 = vmatprep.subr.bf16.mxu0 0
    %101 = vmatpush1.bf16.msra.mxu0 0
    %102 = vmatprep.subr.bf16.mxu0 0
    %103 = vmatpush1.bf16.msra.mxu0 0
    %104 = vmatprep.subr.bf16.mxu0 0
    %105 = vmatpush1.bf16.msra.mxu0 0
    %106 = vmatprep.mubr.bf16.mxu0 0
    %107 = vmatmul.mubr.bf16.gmra.mrb[0].mxu0 %v72
    %v108 = vpop.f32.mrb[0].mxu0
    %v109 = vadd.f32 %v56, %v108
    %v110 = vpop.f32.mrb[0].mxu0
    %v111 = vpop.f32.mrb[0].mxu0
    %v112 = vadd.f32 %v56, %v111
    %v113 = vpop.f32.mrb[0].mxu0
    %114 = vdwg.mxu0
    %v115 = vpack.c.bf16 %v112, %v109
    %v117 = vunpack.c.l.b16 %v115
    %v118 = vunpack.c.h.b16 %v115
    %v119 = vpack.c.b16 %v117, %v117
    %v120 = vpack.c.b16 %v118, %v118
    %vm123 = vcmask 257024
    %124 = vst.msk [vmem:[#allocation7] sm:$0xf] %vm123, %v119
    %125 = vst.msk [vmem:[#allocation7 + $0x4] sm:$0xf] %vm123, %v120
    // Predicated region
    $region22: #{tpu_custom_call.1} parent=1 // pred_check
      _
    $region23: #{tpu_custom_call.1} parent=1 // pred_check_branch
      %127 = sbr.rel (0) target = $region25
    $region24: #{tpu_custom_call.1} parent=1 // pred_region
      %s129 = ssub.s32 128, 128
      %130 = vsyncadd [#allocation4], %s129
      %s131 = sshll.u32 [#allocation7], 4
      %s132 = int_to_ptr.vmem [resolvable:$true] %s131
      %137 = dma.vmem_to_hbm [thread:$0]  %s132, 128, %s3, [#allocation4], 64, 64, 4
    $region25: #{tpu_custom_call.1} parent=1 // pred_fallthru
      _
    // Predicated region
    $region26: #{tpu_custom_call.1} parent=1 // pred_check
      _
    $region27: #{tpu_custom_call.1} parent=1 // pred_check_branch
      %139 = sbr.rel (0) target = $region29
    $region28: #{tpu_custom_call.1} parent=1 // pred_region
      %140 = dma.done [#allocation4], 128
    $region29: #{tpu_custom_call.1} parent=1 // pred_fallthru
      _
    %141 = vsyncpa [#allocation3], 1
    %142 = vsyncpa [#allocation6], 1
    %143 = vsyncpa [#allocation4], 1

</llo_original>
